<compile_context>
chip_gen: v6e
topology: v6e:2x2x1
jax: 0.10.0
libtpu: 0.0.40
codegen_flags: <defaults>
</compile_context>

<pallas_src>
import functools
from math import ceil

import numpy as np
import jax
import jax.numpy as jnp
from jax.experimental import pallas as pl
from jax.experimental.pallas import tpu as pltpu


# =============================================================================
# Small DSVT-style config (synthetic).
# sparse_shape is (x, y, z); voxel_coords rows are (batch_idx, z, y, x).
# =============================================================================
MODEL_CFG = dict(
    sparse_shape=(16, 16, 2),
    window_shape=[[4, 4, 2], [4, 4, 1]],        # per stage (before hybrid expansion)
    downsample_stride=[[2, 2, 2]],              # between stage0 and stage1
    d_model=[32, 32],
    set_info=[[8, 2], [8, 2]],                  # [set_size, block_num] per stage
    hybrid_factor=[2, 2, 1],
    shifts_list=[[[0, 0, 0], [2, 2, 0]], [[0, 0, 0], [2, 2, 0]]],
    normalize_pos=False,
)

_POSEMBED_TN = 512          # voxel tile for the fused pos-embed kernel
_WINCOORD_LANE_TILE = 8192  # lane tile for the window-coords kernel


# =============================================================================
# Pallas kernels
# =============================================================================
def _posembed_fused_kernel(x_ref, w1_ref, b1_ref, w2_ref, b2_ref, out_ref):
    # Fused PositionEmbeddingLearned for all (block, shift) heads of a stage.
    # BN (eval) + centering already folded into w1/b1 -> just dot -> relu -> dot.
    h = jnp.dot(x_ref[...], w1_ref[...], preferred_element_type=jnp.float32) + b1_ref[...]
    h = jnp.maximum(h, 0.0)
    out_ref[...] = jnp.dot(h, w2_ref[...], preferred_element_type=jnp.float32) + b2_ref[...]


def _window_coords_kernel(c_ref, out_ref, *, shift_params):
    # layout: c_ref (4, T) int32 channel-major, rows = (batch, z, y, x).
    # out_ref (8, T): rows 4*s..4*s+3 = (batch_win_inds, ciw_z, ciw_y, ciw_x) for shift s.
    b = c_ref[0:1, :]
    z_in = c_ref[1:2, :]
    y_in = c_ref[2:3, :]
    x_in = c_ref[3:4, :]

    def div_mod(v, d):
        # Operands are non-negative. Power-of-two window dims -> single-op shift/mask.
        if d > 0 and (d & (d - 1)) == 0:
            k = d.bit_length() - 1
            return v >> k, v & (d - 1)
        q = jax.lax.div(v, jnp.full_like(v, d))
        return q, v - q * d

    for si, (win, shift, max_num_win) in enumerate(shift_params):
        win_x, win_y, win_z = win
        sft_x, sft_y, sft_z = shift
        mnx, mny, mnz = max_num_win
        x = x_in + sft_x
        y = y_in + sft_y
        z = z_in + sft_z
        wcx, rx = div_mod(x, win_x)
        wcy, ry = div_mod(y, win_y)
        wcz, rz = div_mod(z, win_z)
        row = 4 * si
        out_ref[row:row + 1, :] = b * (mnx * mny * mnz) + wcx * (mny * mnz) + wcy * mnz + wcz
        out_ref[row + 1:row + 2, :] = rz
        out_ref[row + 2:row + 3, :] = ry
        out_ref[row + 3:row + 4, :] = rx


# =============================================================================
# Cached pallas_call builders (avoid re-tracing every forward)
# =============================================================================
@functools.lru_cache(maxsize=None)
def _build_window_coords_call(shift_params, n_pad, tile):
    kernel = functools.partial(_window_coords_kernel, shift_params=shift_params)
    return pl.pallas_call(
        kernel,
        out_shape=jax.ShapeDtypeStruct((8, n_pad), jnp.int32),
        grid=(n_pad // tile,),
        in_specs=[pl.BlockSpec((4, tile), lambda i: (0, i))],
        out_specs=pl.BlockSpec((8, tile), lambda i: (0, i)),
        compiler_params=pltpu.CompilerParams(dimension_semantics=("parallel",)),
    )


@functools.lru_cache(maxsize=None)
def _build_posembed_call(n_pad, tn, k_total, out_dim):
    return pl.pallas_call(
        _posembed_fused_kernel,
        out_shape=jax.ShapeDtypeStruct((n_pad, out_dim), jnp.float32),
        grid=(n_pad // tn,),
        in_specs=[
            pl.BlockSpec((tn, k_total), lambda i: (i, 0)),
            pl.BlockSpec((k_total, out_dim), lambda i: (0, 0)),
            pl.BlockSpec((1, out_dim), lambda i: (0, 0)),
            pl.BlockSpec((out_dim, out_dim), lambda i: (0, 0)),
            pl.BlockSpec((1, out_dim), lambda i: (0, 0)),
        ],
        out_specs=pl.BlockSpec((tn, out_dim), lambda i: (i, 0)),
        compiler_params=pltpu.CompilerParams(dimension_semantics=("parallel",)),
    )


# =============================================================================
# Pallas wrappers
# =============================================================================
def _get_window_coors_both_shifts_pallas(coors, sparse_shape, window_shapes, shift_lists):
    """get_window_coors for BOTH shifts of a stage in one Pallas call.
    Returns [(batch_win_inds, coors_in_win), ...] per shift."""
    ssx, ssy, ssz = sparse_shape
    shift_params = []
    for shift_id in range(2):
        win_x, win_y, win_z = window_shapes[shift_id]
        mnx = int(ceil(ssx / win_x)) + 1
        mny = int(ceil(ssy / win_y)) + 1
        mnz = int(ceil(ssz / win_z)) + 1
        sft_x, sft_y, sft_z = shift_lists[shift_id]
        if win_z == ssz:
            sft_z = 0
        shift_params.append(((win_x, win_y, win_z), (sft_x, sft_y, sft_z), (mnx, mny, mnz)))

    n = coors.shape[0]
    n128 = max(128, ((n + 127) // 128) * 128)
    if n128 <= _WINCOORD_LANE_TILE:
        tile, n_pad = n128, n128
    else:
        tile = _WINCOORD_LANE_TILE
        n_pad = ((n + tile - 1) // tile) * tile
    ct = jnp.zeros((4, n_pad), jnp.int32).at[:, :n].set(jnp.transpose(coors).astype(jnp.int32))

    call = _build_window_coords_call(tuple(shift_params), n_pad, tile)
    out = call(ct)
    # TODO(synk): PyTorch uses int64 (.long()) window ids; int32 here (JAX x64 disabled) can
    # overflow for very large sparse_shape x batch products.
    results = []
    for si in range(2):
        bwi = out[4 * si, :n]
        ciw = jnp.transpose(out[4 * si + 1:4 * si + 4, :n])
        results.append((bwi, ciw))
    return results


# =============================================================================
# PositionEmbeddingLearned parameter init + fold
# (Linear(in, d) -> BN1d(d) -> ReLU -> Linear(d, d)); BN folded to scale/shift.
# =============================================================================
def _init_posembed_params(key, input_dim, d_model):
    ks = jax.random.split(key, 6)
    w1 = jax.random.normal(ks[0], (input_dim, d_model), jnp.float32) / np.sqrt(input_dim)
    b1 = 0.01 * jax.random.normal(ks[1], (d_model,), jnp.float32)
    gamma = 1.0 + 0.1 * jax.random.normal(ks[2], (d_model,), jnp.float32)
    beta = 0.1 * jax.random.normal(ks[3], (d_model,), jnp.float32)
    running_mean = 0.1 * jax.random.normal(ks[4], (d_model,), jnp.float32)
    running_var = jnp.ones((d_model,), jnp.float32)
    eps = 1e-5
    bn_scale = gamma / jnp.sqrt(running_var + eps)
    bn_shift = beta - running_mean * bn_scale
    # TODO(synk): eval-mode BatchNorm1d (running stats); training-mode batch statistics would
    # need an N-masked global reduction inside the kernel.
    w2 = jax.random.normal(ks[5], (d_model, d_model), jnp.float32) / np.sqrt(d_model)
    b2 = 0.01 * jax.random.normal(jax.random.fold_in(ks[5], 7), (d_model,), jnp.float32)
    return dict(w1=w1, b1=b1, bn_scale=bn_scale, bn_shift=bn_shift, w2=w2, b2=b2)


def _fold_posembed_block(p, window_shape, normalize_pos):
    """Fold centering (+normalize scale) and eval-mode BN into (W1, b1).
    Returns W1 rows in coors_in_win column order (z, y, x)."""
    w1 = np.asarray(p["w1"], np.float32)
    b1 = np.asarray(p["b1"], np.float32)
    bn_s = np.asarray(p["bn_scale"], np.float32)
    bn_t = np.asarray(p["bn_shift"], np.float32)
    d = w1.shape[1]
    if len(window_shape) == 2:
        ndim, (win_x, win_y), win_z = 2, window_shape, 0
    elif window_shape[-1] == 1:
        ndim, (win_x, win_y), win_z = 2, window_shape[:2], 0
    else:
        win_x, win_y, win_z = window_shape
        ndim = 3
    sx = (2 * 3.1415 / win_x) if normalize_pos else 1.0
    sy = (2 * 3.1415 / win_y) if normalize_pos else 1.0
    sz = (2 * 3.1415 / win_z) if (normalize_pos and ndim == 3) else 1.0
    ox = -(win_x / 2.0) * sx
    oy = -(win_y / 2.0) * sy
    oz = -(win_z / 2.0) * sz
    w1x, w1y = w1[0], w1[1]
    w1z = w1[2] if ndim == 3 else np.zeros((d,), np.float32)
    w_zyx = np.zeros((3, d), np.float32)
    w_zyx[0] = sz * w1z * bn_s
    w_zyx[1] = sy * w1y * bn_s
    w_zyx[2] = sx * w1x * bn_s
    b_fold = (b1 + ox * w1x + oy * w1y + oz * w1z) * bn_s + bn_t
    return w_zyx, b_fold.astype(np.float32), np.asarray(p["w2"], np.float32), np.asarray(p["b2"], np.float32)


# =============================================================================
# DSVTInputLayer in JAX (Pallas for the coordinate math & pos-embed MLP hot paths)
# =============================================================================
class DSVTInputLayerPallas:
    def __init__(self, model_cfg, key):
        self.sparse_shape = model_cfg["sparse_shape"]
        self.downsample_stride = model_cfg["downsample_stride"]
        self.d_model = model_cfg["d_model"]
        self.set_info = model_cfg["set_info"]
        self.stage_num = len(self.d_model)
        self.hybrid_factor = model_cfg["hybrid_factor"]
        base_ws = model_cfg["window_shape"]
        self.window_shape = [
            [base_ws[s], [base_ws[s][c] * self.hybrid_factor[c] for c in range(3)]]
            for s in range(self.stage_num)
        ]
        self.shift_list = model_cfg["shifts_list"]
        self.normalize_pos = model_cfg["normalize_pos"]
        self.num_shifts = [2] * self.stage_num
        self.sparse_shape_list = [self.sparse_shape]
        for ds in self.downsample_stride:
            last = self.sparse_shape_list[-1]
            self.sparse_shape_list.append(
                (ceil(last[0] / ds[0]), ceil(last[1] / ds[1]), ceil(last[2] / ds[2]))
            )
        # raw posembed params: [stage][block][shift]
        self.posembed_params = []
        for i in range(len(self.set_info)):
            input_dim = 3 if self.sparse_shape_list[i][-1] > 1 else 2
            stage = []
            for _j in range(self.set_info[i][1]):
                block = []
                for _s in range(self.num_shifts[i]):
                    key, sub = jax.random.split(key)
                    block.append(_init_posembed_params(sub, input_dim, self.d_model[i]))
                stage.append(block)
            self.posembed_params.append(stage)
        # pre-fold + fuse all (block, shift) heads per stage into block-diagonal weights
        self.fused_posembed = [self._build_stage_fused_weights(s) for s in range(self.stage_num)]

    def _build_stage_fused_weights(self, stage_id):
        d = self.d_model[stage_id]
        nb = self.set_info[stage_id][1]
        ns = self.num_shifts[stage_id]
        KP = 4                      # per-shift padded input columns (z, y, x, pad)
        k_total = KP * ns
        out_dim = d * nb * ns       # 32 * 2 * 2 = 128 -> lane-dense output
        W1 = np.zeros((k_total, out_dim), np.float32)
        B1 = np.zeros((1, out_dim), np.float32)
        W2 = np.zeros((out_dim, out_dim), np.float32)
        B2 = np.zeros((1, out_dim), np.float32)
        for shift_id in range(ns):
            ws = self.window_shape[stage_id][shift_id]
            for block_id in range(nb):
                p = self.posembed_params[stage_id][block_id][shift_id]
                w_zyx, b_fold, w2, b2 = _fold_posembed_block(p, ws, self.normalize_pos)
                c0 = (shift_id * nb + block_id) * d
                W1[shift_id * KP:shift_id * KP + 3, c0:c0 + d] = w_zyx
                B1[0, c0:c0 + d] = b_fold
                W2[c0:c0 + d, c0:c0 + d] = w2
                B2[0, c0:c0 + d] = b2
        return dict(w1=jnp.asarray(W1), b1=jnp.asarray(B1), w2=jnp.asarray(W2), b2=jnp.asarray(B2),
                    d=d, nb=nb, ns=ns, KP=KP, k_total=k_total, out_dim=out_dim)

    # ----------------------------------------------------------------- forward
    def forward(self, batch_dict):
        voxel_feats = batch_dict["voxel_features"]
        voxel_coors = batch_dict["voxel_coords"].astype(jnp.int32)
        voxel_info = {}
        voxel_info["voxel_feats_stage0"] = voxel_feats
        voxel_info["voxel_coors_stage0"] = voxel_coors
        for stage_id in range(self.stage_num):
            voxel_info = self.window_partition(voxel_info, stage_id)
            voxel_info = self.get_set(voxel_info, stage_id)
            # pos-embed: ONE fused Pallas call per stage covering all (block, shift) heads
            ciw_list = [
                voxel_info[f"coors_in_win_stage{stage_id}_shift{s}"]
                for s in range(self.num_shifts[stage_id])
            ]
            pe = self._pos_embed_stage(ciw_list, stage_id)
            for block_id in range(self.set_info[stage_id][1]):
                for shift_id in range(self.num_shifts[stage_id]):
                    voxel_info[f"pos_embed_stage{stage_id}_block{block_id}_shift{shift_id}"] = (
                        pe[(block_id, shift_id)]
                    )
            if stage_id < self.stage_num - 1:
                voxel_info = self.subm_pooling(voxel_info, stage_id)
        return voxel_info

    # -------------------------------------------------------- window partition
    def window_partition(self, voxel_info, stage_id):
        results = _get_window_coors_both_shifts_pallas(
            voxel_info[f"voxel_coors_stage{stage_id}"],
            self.sparse_shape_list[stage_id],
            self.window_shape[stage_id],
            self.shift_list[stage_id],
        )
        for i, (bwi, ciw) in enumerate(results):
            voxel_info[f"batch_win_inds_stage{stage_id}_shift{i}"] = bwi
            voxel_info[f"coors_in_win_stage{stage_id}_shift{i}"] = ciw
        return voxel_info

    # --------------------------------------------------------------- pos embed
    def _pos_embed_stage(self, ciw_list, stage_id):
        fw = self.fused_posembed[stage_id]
        KP, k_total, out_dim, ns, nb, d = fw["KP"], fw["k_total"], fw["out_dim"], fw["ns"], fw["nb"], fw["d"]
        n = ciw_list[0].shape[0]
        tn = _POSEMBED_TN
        n_pad = max(tn, ((n + tn - 1) // tn) * tn)
        x = jnp.zeros((n_pad, k_total), jnp.float32)
        for si, ciw in enumerate(ciw_list):
            x = x.at[:n, si * KP:si * KP + 3].set(ciw.astype(jnp.float32))
        call = _build_posembed_call(n_pad, tn, k_total, out_dim)
        out = call(x, fw["w1"], fw["b1"], fw["w2"], fw["b2"])
        res = {}
        for si in range(ns):
            for bi in range(nb):
                c0 = (si * nb + bi) * d
                res[(bi, si)] = out[:n, c0:c0 + d]
        return res

    # -------------------------------------------------------------- set helper
    @staticmethod
    def _get_inner_win_inds(contig_win_inds):
        # TODO(synk): the CUDA ingroup_inds op assigns per-voxel ranks in a nondeterministic
        # (atomic) order; the final set indices are invariant to that choice, so we use the
        # deterministic rank-within-window by order of appearance.
        n = contig_win_inds.shape[0]
        counts = jnp.bincount(contig_win_inds).astype(jnp.int32)
        starts = jnp.concatenate(
            [jnp.zeros((1,), jnp.int32), jnp.cumsum(counts)[:-1].astype(jnp.int32)]
        )
        order = jnp.argsort(contig_win_inds)  # stable
        ranks_in_sorted = jnp.arange(n, dtype=jnp.int32) - starts[contig_win_inds[order]]
        return jnp.zeros((n,), jnp.int32).at[order].set(ranks_in_sorted)

    def get_set_single_shift(self, batch_win_inds, stage_id, shift_id, coors_in_win):
        # TODO(synk): dynamic-shape unique/bincount/argsort glue forces host sync; no
        # static-shape Pallas equivalent without a max-voxel padding rewrite.
        voxel_num_set = self.set_info[stage_id][0]
        win_x, win_y, win_z = self.window_shape[stage_id][shift_id]
        max_voxel = win_x * win_y * win_z

        _, contig = jnp.unique(batch_win_inds, return_inverse=True)
        contig = contig.reshape(-1).astype(jnp.int32)
        n = contig.shape[0]
        voxelnum_per_win = jnp.bincount(contig).astype(jnp.int32)
        win_num = int(voxelnum_per_win.shape[0])
        setnum_per_win = (voxelnum_per_win + voxel_num_set - 1) // voxel_num_set

        # get_continous_inds
        set_win_inds = jnp.repeat(jnp.arange(win_num, dtype=jnp.int32), setnum_per_win)
        set_num = int(set_win_inds.shape[0])
        set_start = jnp.concatenate(
            [jnp.zeros((1,), jnp.int32), jnp.cumsum(setnum_per_win)[:-1].astype(jnp.int32)]
        )
        set_inds_in_win = jnp.arange(set_num, dtype=jnp.int32) - set_start[set_win_inds]

        offset_idx = set_inds_in_win[:, None] * voxel_num_set
        base_idx = jnp.arange(voxel_num_set, dtype=jnp.int32)[None, :]
        base_select_idx = (offset_idx + base_idx) * voxelnum_per_win[set_win_inds][:, None]
        # integer floor-div == torch's double-division followed by floor (all operands >= 0)
        base_select_idx = base_select_idx // (
            setnum_per_win[set_win_inds][:, None] * voxel_num_set
        )
        select_idx = base_select_idx + set_win_inds[:, None] * max_voxel

        inner_voxel_inds = self._get_inner_win_inds(contig)
        global_voxel_inds = contig * max_voxel + inner_voxel_inds
        order1 = jnp.argsort(global_voxel_inds)

        def build(sort_key):
            order2 = jnp.argsort(sort_key)
            inner_sorted = jnp.zeros((n,), jnp.int32).at[order2].set(inner_voxel_inds[order1])
            voxel_inds_in_batch = inner_sorted + max_voxel * contig
            padding = jnp.full((win_num * max_voxel,), -1, jnp.int32)
            padding = padding.at[voxel_inds_in_batch].set(jnp.arange(n, dtype=jnp.int32))
            return padding[select_idx]

        gsorty = (contig * max_voxel + coors_in_win[:, 1] * win_x * win_z
                  + coors_in_win[:, 2] * win_z + coors_in_win[:, 0])
        gsortx = (contig * max_voxel + coors_in_win[:, 2] * win_y * win_z
                  + coors_in_win[:, 1] * win_z + coors_in_win[:, 0])
        return jnp.stack([build(gsorty), build(gsortx)], axis=0)

    def get_set(self, voxel_info, stage_id):
        for shift_id in range(2):
            bwi = voxel_info[f"batch_win_inds_stage{stage_id}_shift{shift_id}"]
            ciw = voxel_info[f"coors_in_win_stage{stage_id}_shift{shift_id}"]
            svi = self.get_set_single_shift(bwi, stage_id, shift_id, ciw)
            voxel_info[f"set_voxel_inds_stage{stage_id}_shift{shift_id}"] = svi
            prefix = jnp.roll(svi, shift=1, axis=-1).at[:, :, 0].set(-1)
            voxel_info[f"set_voxel_mask_stage{stage_id}_shift{shift_id}"] = svi == prefix
        return voxel_info

    # ------------------------------------------------------------ subm pooling
    @staticmethod
    def _get_pooling_index(coors, sparse_shape, window_shape):
        win_x, win_y, win_z = window_shape
        ssx, ssy, ssz = sparse_shape
        mnx, mny, mnz = int(ceil(ssx / win_x)), int(ceil(ssy / win_y)), int(ceil(ssz / win_z))
        cx, cy, cz = coors[:, 3], coors[:, 2], coors[:, 1]
        wx, wy, wz = cx // win_x, cy // win_y, cz // win_z
        batch_win_inds = coors[:, 0] * (mnx * mny * mnz) + wx * (mny * mnz) + wy * mnz + wz
        index_in_win = (cx % win_x) * win_y * win_z + (cy % win_y) * win_z + (cz % win_z)
        batch_win_coors = jnp.stack([coors[:, 0], wz, wy, wx], axis=-1)
        return batch_win_inds, index_in_win, batch_win_coors

    def subm_pooling(self, voxel_info, stage_id):
        ds = self.downsample_stride[stage_id]
        coors = voxel_info[f"voxel_coors_stage{stage_id}"]
        batch_win_inds, index_in_win, batch_win_coors = self._get_pooling_index(
            coors, self.sparse_shape_list[stage_id], ds
        )
        uniq, inv = jnp.unique(batch_win_inds, return_inverse=True)
        inv = inv.reshape(-1).astype(jnp.int32)
        n = inv.shape[0]
        # index of first occurrence of each unique value (same as torch's flip/scatter trick)
        first_idx = (
            jnp.full((uniq.shape[0],), n, jnp.int32)
            .at[inv]
            .min(jnp.arange(n, dtype=jnp.int32))
        )
        voxel_info[f"pooling_mapping_index_stage{stage_id + 1}"] = inv
        voxel_info[f"pooling_index_in_pool_stage{stage_id + 1}"] = index_in_win.astype(jnp.int32)
        voxel_info[f"pooling_preholder_feats_stage{stage_id + 1}"] = jnp.zeros(
            (int(uniq.shape[0]), int(np.prod(ds)), self.d_model[stage_id]), jnp.float32
        )
        voxel_info[f"voxel_coors_stage{stage_id + 1}"] = batch_win_coors[first_idx].astype(jnp.int32)
        return voxel_info


# =============================================================================
# numpy references for light sanity checking
# =============================================================================
def _np_window_coors(coors, sparse_shape, window_shape, shift_list):
    win_x, win_y, win_z = window_shape
    ssx, ssy, ssz = sparse_shape
    mnx, mny, mnz = ceil(ssx / win_x) + 1, ceil(ssy / win_y) + 1, ceil(ssz / win_z) + 1
    sx, sy, sz = shift_list
    if win_z == ssz:
        sz = 0
    x = coors[:, 3] + sx
    y = coors[:, 2] + sy
    z = coors[:, 1] + sz
    bwi = coors[:, 0] * (mnx * mny * mnz) + (x // win_x) * (mny * mnz) + (y // win_y) * mnz + (z // win_z)
    ciw = np.stack([z % win_z, y % win_y, x % win_x], axis=-1)
    return bwi, ciw


def _np_posembed(loc, params):
    p = {k: np.asarray(v, np.float64) for k, v in params.items()}
    h = loc @ p["w1"] + p["b1"]
    h = h * p["bn_scale"] + p["bn_shift"]
    h = np.maximum(h, 0.0)
    return h @ p["w2"] + p["b2"]


# =============================================================================
# main
# =============================================================================
if __name__ == "__main__":
    key = jax.random.PRNGKey(0)
    batch_size = 2
    ssx, ssy, ssz = MODEL_CFG["sparse_shape"]
    n_voxels = 120

    # unique voxel coords: sample without replacement from the dense grid, decode to (b, z, y, x)
    total = batch_size * ssz * ssy * ssx
    perm = jax.random.permutation(key, total)[:n_voxels]
    b = perm // (ssz * ssy * ssx)
    rem = perm % (ssz * ssy * ssx)
    z = rem // (ssy * ssx)
    rem2 = rem % (ssy * ssx)
    y = rem2 // ssx
    x = rem2 % ssx
    voxel_coords = jnp.stack([b, z, y, x], axis=-1).astype(jnp.int32)
    voxel_features = jax.random.normal(
        jax.random.fold_in(key, 1), (n_voxels, MODEL_CFG["d_model"][0]), jnp.float32
    )

    layer = DSVTInputLayerPallas(MODEL_CFG, jax.random.PRNGKey(42))
    voxel_info = layer.forward(
        {"voxel_features": voxel_features, "voxel_coords": voxel_coords}
    )
    jax.block_until_ready(voxel_info)

    # --- sanity check 1: Pallas window partition vs numpy reference (exact int match) ---
    coors_np = np.asarray(voxel_coords)
    for shift_id in range(2):
        ref_bwi, ref_ciw = _np_window_coors(
            coors_np, layer.sparse_shape_list[0],
            layer.window_shape[0][shift_id], layer.shift_list[0][shift_id],
        )
        assert np.array_equal(ref_bwi, np.asarray(voxel_info[f"batch_win_inds_stage0_shift{shift_id}"]))
        assert np.array_equal(ref_ciw, np.asarray(voxel_info[f"coors_in_win_stage0_shift{shift_id}"]))

    # --- sanity check 2: fused pos-embed vs unfused numpy reference (checks fold + layout) ---
    for (block_id, shift_id) in [(0, 0), (0, 1), (1, 1)]:
        ws = layer.window_shape[0][shift_id]
        ciw = np.asarray(voxel_info[f"coors_in_win_stage0_shift{shift_id}"]).astype(np.float64)
        loc = np.stack(
            [ciw[:, 2] - ws[0] / 2.0, ciw[:, 1] - ws[1] / 2.0, ciw[:, 0] - ws[2] / 2.0], axis=-1
        )
        ref = _np_posembed(loc, layer.posembed_params[0][block_id][shift_id])
        got = np.asarray(voxel_info[f"pos_embed_stage0_block{block_id}_shift{shift_id}"])
        assert got.shape == (n_voxels, MODEL_CFG["d_model"][0])
        assert np.all(np.isfinite(got))
        assert np.allclose(got, ref, rtol=5e-2, atol=5e-2)

    # stage-1 (ndim=2 pos-embed) reference
    n1 = int(voxel_info["voxel_coors_stage1"].shape[0])
    ws1 = layer.window_shape[1][0]
    ciw1 = np.asarray(voxel_info["coors_in_win_stage1_shift0"]).astype(np.float64)
    loc1 = np.stack([ciw1[:, 2] - ws1[0] / 2.0, ciw1[:, 1] - ws1[1] / 2.0], axis=-1)
    ref1 = _np_posembed(loc1, layer.posembed_params[1][0][0])
    got1 = np.asarray(voxel_info["pos_embed_stage1_block0_shift0"])
    assert got1.shape == (n1, MODEL_CFG["d_model"][1])
    assert np.allclose(got1, ref1, rtol=5e-2, atol=5e-2)

    # --- basic structural checks ---
    set_size = MODEL_CFG["set_info"][0][0]
    svi = np.asarray(voxel_info["set_voxel_inds_stage0_shift0"])
    assert svi.ndim == 3 and svi.shape[0] == 2 and svi.shape[2] == set_size
    assert voxel_info["pooling_preholder_feats_stage1"].shape[1] == int(
        np.prod(MODEL_CFG["downsample_stride"][0])
    )
    assert voxel_info["voxel_coors_stage1"].shape[1] == 4

    print("KERNEL_OK")
</pallas_src>

<mosaic_0001>
module attributes {stable_mosaic.version = 11 : i64} {
  func.func @_window_coords_kernel(%arg0: i32, %arg1: memref<4x128xi32, #tpu.memory_space<vmem>>, %arg2: memref<8x128xi32, #tpu.memory_space<vmem>>) attributes {dimension_semantics = [#tpu.dimension_semantics<parallel>], iteration_bounds = array<i64: 1>, scalar_prefetch = 0 : i64, scratch_operands = 0 : i64, tpu.core_type = #tpu.core_type<tc>, window_params = [{transform_indices = @transform_0, window_bounds = array<i64: 4, 128>}, {transform_indices = @transform_1, window_bounds = array<i64: 8, 128>}]} {
    %c0 = arith.constant 0 : index
    %c0_0 = arith.constant 0 : index
    %0 = vector.load %arg1[%c0, %c0_0] : memref<4x128xi32, #tpu.memory_space<vmem>>, vector<1x128xi32>
    %c1 = arith.constant 1 : index
    %c0_1 = arith.constant 0 : index
    %1 = vector.load %arg1[%c1, %c0_1] : memref<4x128xi32, #tpu.memory_space<vmem>>, vector<1x128xi32>
    %c2 = arith.constant 2 : index
    %c0_2 = arith.constant 0 : index
    %2 = vector.load %arg1[%c2, %c0_2] : memref<4x128xi32, #tpu.memory_space<vmem>>, vector<1x128xi32>
    %c3 = arith.constant 3 : index
    %c0_3 = arith.constant 0 : index
    %3 = vector.load %arg1[%c3, %c0_3] : memref<4x128xi32, #tpu.memory_space<vmem>>, vector<1x128xi32>
    %c0_i32 = arith.constant 0 : i32
    %4 = vector.broadcast %c0_i32 : i32 to vector<1x128xi32>
    %5 = arith.addi %3, %4 : vector<1x128xi32>
    %c0_i32_4 = arith.constant 0 : i32
    %6 = vector.broadcast %c0_i32_4 : i32 to vector<1x128xi32>
    %7 = arith.addi %2, %6 : vector<1x128xi32>
    %c0_i32_5 = arith.constant 0 : i32
    %8 = vector.broadcast %c0_i32_5 : i32 to vector<1x128xi32>
    %9 = arith.addi %1, %8 : vector<1x128xi32>
    %c2_i32 = arith.constant 2 : i32
    %10 = vector.broadcast %c2_i32 : i32 to vector<1x128xi32>
    %11 = arith.shrsi %5, %10 : vector<1x128xi32>
    %c3_i32 = arith.constant 3 : i32
    %12 = vector.broadcast %c3_i32 : i32 to vector<1x128xi32>
    %13 = arith.andi %5, %12 : vector<1x128xi32>
    %c2_i32_6 = arith.constant 2 : i32
    %14 = vector.broadcast %c2_i32_6 : i32 to vector<1x128xi32>
    %15 = arith.shrsi %7, %14 : vector<1x128xi32>
    %c3_i32_7 = arith.constant 3 : i32
    %16 = vector.broadcast %c3_i32_7 : i32 to vector<1x128xi32>
    %17 = arith.andi %7, %16 : vector<1x128xi32>
    %c1_i32 = arith.constant 1 : i32
    %18 = vector.broadcast %c1_i32 : i32 to vector<1x128xi32>
    %19 = arith.shrsi %9, %18 : vector<1x128xi32>
    %c1_i32_8 = arith.constant 1 : i32
    %20 = vector.broadcast %c1_i32_8 : i32 to vector<1x128xi32>
    %21 = arith.andi %9, %20 : vector<1x128xi32>
    %c50_i32 = arith.constant 50 : i32
    %22 = vector.broadcast %c50_i32 : i32 to vector<1x128xi32>
    %23 = arith.muli %0, %22 : vector<1x128xi32>
    %c10_i32 = arith.constant 10 : i32
    %24 = vector.broadcast %c10_i32 : i32 to vector<1x128xi32>
    %25 = arith.muli %11, %24 : vector<1x128xi32>
    %26 = arith.addi %23, %25 : vector<1x128xi32>
    %c2_i32_9 = arith.constant 2 : i32
    %27 = vector.broadcast %c2_i32_9 : i32 to vector<1x128xi32>
    %28 = arith.muli %15, %27 : vector<1x128xi32>
    %29 = arith.addi %26, %28 : vector<1x128xi32>
    %30 = arith.addi %29, %19 : vector<1x128xi32>
    %c0_10 = arith.constant 0 : index
    %c0_11 = arith.constant 0 : index
    %31 = vector.load %arg2[%c0_10, %c0_11] : memref<8x128xi32, #tpu.memory_space<vmem>>, vector<1x128xi32>
    tpu.vector_store %arg2[%c0_10, %c0_11], %30 {strides = array<i32>} : memref<8x128xi32, #tpu.memory_space<vmem>>, vector<1x128xi32>,
    %c1_12 = arith.constant 1 : index
    %c0_13 = arith.constant 0 : index
    %32 = vector.load %arg2[%c1_12, %c0_13] : memref<8x128xi32, #tpu.memory_space<vmem>>, vector<1x128xi32>
    tpu.vector_store %arg2[%c1_12, %c0_13], %21 {strides = array<i32>} : memref<8x128xi32, #tpu.memory_space<vmem>>, vector<1x128xi32>,
    %c2_14 = arith.constant 2 : index
    %c0_15 = arith.constant 0 : index
    %33 = vector.load %arg2[%c2_14, %c0_15] : memref<8x128xi32, #tpu.memory_space<vmem>>, vector<1x128xi32>
    tpu.vector_store %arg2[%c2_14, %c0_15], %17 {strides = array<i32>} : memref<8x128xi32, #tpu.memory_space<vmem>>, vector<1x128xi32>,
    %c3_16 = arith.constant 3 : index
    %c0_17 = arith.constant 0 : index
    %34 = vector.load %arg2[%c3_16, %c0_17] : memref<8x128xi32, #tpu.memory_space<vmem>>, vector<1x128xi32>
    tpu.vector_store %arg2[%c3_16, %c0_17], %13 {strides = array<i32>} : memref<8x128xi32, #tpu.memory_space<vmem>>, vector<1x128xi32>,
    %c2_i32_18 = arith.constant 2 : i32
    %35 = vector.broadcast %c2_i32_18 : i32 to vector<1x128xi32>
    %36 = arith.addi %3, %35 : vector<1x128xi32>
    %c2_i32_19 = arith.constant 2 : i32
    %37 = vector.broadcast %c2_i32_19 : i32 to vector<1x128xi32>
    %38 = arith.addi %2, %37 : vector<1x128xi32>
    %c0_i32_20 = arith.constant 0 : i32
    %39 = vector.broadcast %c0_i32_20 : i32 to vector<1x128xi32>
    %40 = arith.addi %1, %39 : vector<1x128xi32>
    %c3_i32_21 = arith.constant 3 : i32
    %41 = vector.broadcast %c3_i32_21 : i32 to vector<1x128xi32>
    %42 = arith.shrsi %36, %41 : vector<1x128xi32>
    %c7_i32 = arith.constant 7 : i32
    %43 = vector.broadcast %c7_i32 : i32 to vector<1x128xi32>
    %44 = arith.andi %36, %43 : vector<1x128xi32>
    %c3_i32_22 = arith.constant 3 : i32
    %45 = vector.broadcast %c3_i32_22 : i32 to vector<1x128xi32>
    %46 = arith.shrsi %38, %45 : vector<1x128xi32>
    %c7_i32_23 = arith.constant 7 : i32
    %47 = vector.broadcast %c7_i32_23 : i32 to vector<1x128xi32>
    %48 = arith.andi %38, %47 : vector<1x128xi32>
    %c1_i32_24 = arith.constant 1 : i32
    %49 = vector.broadcast %c1_i32_24 : i32 to vector<1x128xi32>
    %50 = arith.shrsi %40, %49 : vector<1x128xi32>
    %c1_i32_25 = arith.constant 1 : i32
    %51 = vector.broadcast %c1_i32_25 : i32 to vector<1x128xi32>
    %52 = arith.andi %40, %51 : vector<1x128xi32>
    %c18_i32 = arith.constant 18 : i32
    %53 = vector.broadcast %c18_i32 : i32 to vector<1x128xi32>
    %54 = arith.muli %0, %53 : vector<1x128xi32>
    %c6_i32 = arith.constant 6 : i32
    %55 = vector.broadcast %c6_i32 : i32 to vector<1x128xi32>
    %56 = arith.muli %42, %55 : vector<1x128xi32>
    %57 = arith.addi %54, %56 : vector<1x128xi32>
    %c2_i32_26 = arith.constant 2 : i32
    %58 = vector.broadcast %c2_i32_26 : i32 to vector<1x128xi32>
    %59 = arith.muli %46, %58 : vector<1x128xi32>
    %60 = arith.addi %57, %59 : vector<1x128xi32>
    %61 = arith.addi %60, %50 : vector<1x128xi32>
    %c4 = arith.constant 4 : index
    %c0_27 = arith.constant 0 : index
    %62 = vector.load %arg2[%c4, %c0_27] : memref<8x128xi32, #tpu.memory_space<vmem>>, vector<1x128xi32>
    tpu.vector_store %arg2[%c4, %c0_27], %61 {strides = array<i32>} : memref<8x128xi32, #tpu.memory_space<vmem>>, vector<1x128xi32>,
    %c5 = arith.constant 5 : index
    %c0_28 = arith.constant 0 : index
    %63 = vector.load %arg2[%c5, %c0_28] : memref<8x128xi32, #tpu.memory_space<vmem>>, vector<1x128xi32>
    tpu.vector_store %arg2[%c5, %c0_28], %52 {strides = array<i32>} : memref<8x128xi32, #tpu.memory_space<vmem>>, vector<1x128xi32>,
    %c6 = arith.constant 6 : index
    %c0_29 = arith.constant 0 : index
    %64 = vector.load %arg2[%c6, %c0_29] : memref<8x128xi32, #tpu.memory_space<vmem>>, vector<1x128xi32>
    tpu.vector_store %arg2[%c6, %c0_29], %48 {strides = array<i32>} : memref<8x128xi32, #tpu.memory_space<vmem>>, vector<1x128xi32>,
    %c7 = arith.constant 7 : index
    %c0_30 = arith.constant 0 : index
    %65 = vector.load %arg2[%c7, %c0_30] : memref<8x128xi32, #tpu.memory_space<vmem>>, vector<1x128xi32>
    tpu.vector_store %arg2[%c7, %c0_30], %44 {strides = array<i32>} : memref<8x128xi32, #tpu.memory_space<vmem>>, vector<1x128xi32>,
    return
  }
  func.func @transform_0(%arg0: i32) -> (i32, i32) {
    %c0_i32 = arith.constant 0 : i32
    %c0_i32_0 = arith.constant 0 : i32
    return %c0_i32, %arg0 : i32, i32
  }
  func.func @transform_1(%arg0: i32) -> (i32, i32) {
    %c0_i32 = arith.constant 0 : i32
    %c0_i32_0 = arith.constant 0 : i32
    return %c0_i32, %arg0 : i32, i32
  }
}

</mosaic_0001>

<llo_original>
// kernel: tpu_custom_call.1
$region0: #{tpu_custom_call.1}
  #allocation0 [shape = 'u32[]', space=smem, size = 0x4, offset = 0x4, fixed_abs, tag = 'smem constant byte address 0x4 - core index']
  #allocation1 [shape = 'u32[144,128]{1,0:T(1,128)}', space=vmem, size = 0x12000, scoped, tag = 'internal scratch']
  %s0 = inlined_call_operand.hbm [shape: s32[4,128], index: 0, kind: input, shape index: {}]
  %s1 = inlined_call_operand.hbm [shape: s32[8,128], index: 1, kind: output, shape index: {}]
  %s2 = sld [smem:[#allocation0]]
  $region18: #{tpu_custom_call.1} parent=0
    _
  %s4 = ssub.s32 1, %s2
  %s5 = scalar_select 0, %s4, %s2
  $region1: #{tpu_custom_call.1} parent=0
    #allocation2 [shape = 'u8[2048]{0}', space=vmem, size = 0x800, scoped, tag = 'input window, operand 0, single buffered']
    #allocation3 [shape = 's32[1]{0}', space=sflag, size = 0x4, scoped, tag = 'scoped memory for tpu_custom_call.1']
    #allocation4 [shape = 's32[1]{0}', space=sflag, size = 0x4, scoped, tag = 'scoped memory for tpu_custom_call.1']
    #allocation5 [shape = 'u8[4096]{0}', space=vmem, size = 0x1000, scoped, tag = 'output window, operand 0, single buffered']
    %6 = vsyncpa [#allocation3], 0
    %7 = vsyncpa [#allocation4], 0
    // Predicated region
    $region2: #{tpu_custom_call.1} parent=1 // pred_check
      _
    $region3: #{tpu_custom_call.1} parent=1 // pred_check_branch
      %9 = sbr.rel (0) target = $region5
    $region4: #{tpu_custom_call.1} parent=1 // pred_region
      %s11 = ssub.s32 64, 64
      %12 = vsyncadd [#allocation3], %s11
      %s14 = sshll.u32 [#allocation2], 4
      %s15 = int_to_ptr.vmem [resolvable:$true] %s14
      %17 = dma.hbm_to_vmem [thread:$0]  %s0, 64, %s15, [#allocation3]
    $region5: #{tpu_custom_call.1} parent=1 // pred_fallthru
      _
    // Predicated region
    $region6: #{tpu_custom_call.1} parent=1 // pred_check
      _
    $region7: #{tpu_custom_call.1} parent=1 // pred_check_branch
      %19 = sbr.rel (0) target = $region9
    $region8: #{tpu_custom_call.1} parent=1 // pred_region
      %20 = dma.done [#allocation3], 64
    $region9: #{tpu_custom_call.1} parent=1 // pred_fallthru
      _
    %v21 = vld [vmem:[#allocation2] sm:$0x1]
    %v22 = vld [vmem:[#allocation2 + $0x1] sm:$0x1]
    %v23 = vld [vmem:[#allocation2 + $0x2] sm:$0x1]
    %v24 = vld [vmem:[#allocation2 + $0x3] sm:$0x1]
    %v25 = vshra.s32 %v24, 2
    %v26 = vand.u32 %v24, 3
    %v27 = vshra.s32 %v23, 2
    %v28 = vand.u32 %v23, 3
    %v29 = vshra.s32 %v22, 1
    %v30 = vand.u32 %v22, 1
    %v31 = vmul.u32 %v21, 50
    %v32 = vmul.u32 %v25, 10
    %v33 = vadd.s32 %v31, %v32
    %v34 = vmul.u32 %v27, 2
    %v35 = vadd.s32 %v33, %v34
    %v36 = vadd.s32 %v35, %v29
    %37 = vst [vmem:[#allocation5] sm:$0x1] %v36
    %38 = vst [vmem:[#allocation5 + $0x1] sm:$0x1] %v30
    %39 = vst [vmem:[#allocation5 + $0x2] sm:$0x1] %v28
    %40 = vst [vmem:[#allocation5 + $0x3] sm:$0x1] %v26
    %v41 = vadd.s32 %v24, 2
    %v42 = vadd.s32 %v23, 2
    %v43 = vshra.s32 %v41, 3
    %v44 = vand.u32 %v41, 7
    %v45 = vshra.s32 %v42, 3
    %v46 = vand.u32 %v42, 7
    %v47 = vmul.u32 %v21, 18
    %v48 = vmul.u32 %v43, 6
    %v49 = vadd.s32 %v47, %v48
    %v50 = vmul.u32 %v45, 2
    %v51 = vadd.s32 %v49, %v50
    %v52 = vadd.s32 %v51, %v29
    %53 = vst [vmem:[#allocation5 + $0x4] sm:$0x1] %v52
    %54 = vst [vmem:[#allocation5 + $0x5] sm:$0x1] %v30
    %55 = vst [vmem:[#allocation5 + $0x6] sm:$0x1] %v46
    %56 = vst [vmem:[#allocation5 + $0x7] sm:$0x1] %v44
    // Predicated region
    $region10: #{tpu_custom_call.1} parent=1 // pred_check
      _
    $region11: #{tpu_custom_call.1} parent=1 // pred_check_branch
      %58 = sbr.rel (0) target = $region13
    $region12: #{tpu_custom_call.1} parent=1 // pred_region
      %s60 = ssub.s32 128, 128
      %61 = vsyncadd [#allocation4], %s60
      %s63 = sshll.u32 [#allocation5], 4
      %s64 = int_to_ptr.vmem [resolvable:$true] %s63
      %66 = dma.vmem_to_hbm [thread:$0]  %s64, 128, %s1, [#allocation4]
    $region13: #{tpu_custom_call.1} parent=1 // pred_fallthru
      _
    // Predicated region
    $region14: #{tpu_custom_call.1} parent=1 // pred_check
      _
    $region15: #{tpu_custom_call.1} parent=1 // pred_check_branch
      %68 = sbr.rel (0) target = $region17
    $region16: #{tpu_custom_call.1} parent=1 // pred_region
      %69 = dma.done [#allocation4], 128
    $region17: #{tpu_custom_call.1} parent=1 // pred_fallthru
      _
    %70 = vsyncpa [#allocation3], 1
    %71 = vsyncpa [#allocation4], 1

</llo_original>
